<compile_context>
chip_gen: v7x
topology: tpu7x:2x2x1
jax: 0.10.0
libtpu: 0.0.40
codegen_flags: <defaults>
</compile_context>

<pallas_src>
import jax
import jax.numpy as jnp
from jax import lax
from jax.experimental import pallas as pl
from jax.experimental.pallas import tpu as pltpu


def _round_up(x, m):
    return (x + m - 1) // m * m


# ---------------------------------------------------------------------------
# Kernel A: embedding table resident in VMEM (preferred whenever it fits).
# ---------------------------------------------------------------------------
def _kernel_table_vmem(ids_hbm, v_ref, l_ref, table_ref, o_ref,
                       ids_smem, noise_ref, ids_sem):
    i = pl.program_id(0)

    # Fetch this tile's token ids (HBM -> SMEM); overlapped with the vectorized noise math.
    ids_cp = pltpu.make_async_copy(ids_hbm.at[i], ids_smem, ids_sem)
    ids_cp.start()

    # noise = l * v / ||v||  (single EUP rsqrt; the +1e-16 only guards all-zero padded rows).
    v = v_ref[...]                                              # (TB, D) f32
    sumsq = jnp.sum(v * v, axis=-1, keepdims=True)              # (TB, 1)
    scale = l_ref[...] * lax.rsqrt(sumsq + 1e-16)               # (TB, 1)
    noise_ref[...] = scale * v                                  # one dense full-tile store

    ids_cp.wait()

    tb = ids_smem.shape[0]

    # Fused gather + add: every output row is written exactly once; no o_ref read-back.
    def gather(j, carry):
        idx = ids_smem[j]                                       # scalar token id from SMEM
        row = table_ref[pl.ds(idx, 1), :].astype(jnp.float32)   # dynamic VMEM row read
        o_ref[pl.ds(j, 1), :] = (row + noise_ref[pl.ds(j, 1), :]).astype(o_ref.dtype)
        return carry

    lax.fori_loop(0, tb, gather, 0, unroll=8)


# ---------------------------------------------------------------------------
# Kernel B (fallback): table stays in HBM; data-dependent row gathers are
# double-buffered ACROSS grid steps so their latency hides behind the previous
# tile's compute + output writeback.  Requires sequential grid order.
# ---------------------------------------------------------------------------
def _kernel_table_hbm(ids_hbm, v_ref, l_ref, table_hbm, o_ref,
                      ids_smem, rows_ref, ids_sem, row_sem):
    i = pl.program_id(0)
    n = pl.num_programs(0)
    slot = i % 2
    tb = ids_smem.shape[0]

    def issue_tile(tile_idx, slot_idx):
        # Fetch that tile's ids, then launch its TB row gathers (HBM table -> rows_ref[slot_idx]).
        # All gathers of a slot share one DMA semaphore; this is only valid because every copy
        # has the identical (1, D) size -- keep it that way.
        cp = pltpu.make_async_copy(ids_hbm.at[tile_idx], ids_smem, ids_sem)
        cp.start()
        cp.wait()

        def start_row(j, carry):
            idx = ids_smem[j]
            pltpu.make_async_copy(
                table_hbm.at[pl.ds(idx, 1), :],
                rows_ref.at[slot_idx, pl.ds(j, 1), :],
                row_sem.at[slot_idx],
            ).start()
            return carry

        lax.fori_loop(0, tb, start_row, 0, unroll=8)

    # Prologue: the very first tile's gathers are issued in-step.
    @pl.when(i == 0)
    def _():
        issue_tile(0, 0)

    # Cross-step double buffering: issue tile i+1's gathers now.
    @pl.when(i + 1 < n)
    def _():
        issue_tile(i + 1, 1 - slot)

    # Vectorized noise for the current tile (overlaps with the in-flight gathers).
    v = v_ref[...]
    sumsq = jnp.sum(v * v, axis=-1, keepdims=True)
    scale = l_ref[...] * lax.rsqrt(sumsq + 1e-16)

    # Wait for this tile's TB row gathers (issued at step i-1, or just above when i == 0).
    # Each wait consumes one (1, D)-sized completion on this slot's semaphore.
    def wait_row(j, carry):
        pltpu.make_async_copy(
            table_hbm.at[pl.ds(0, 1), :],
            rows_ref.at[slot, pl.ds(0, 1), :],
            row_sem.at[slot],
        ).wait()
        return carry

    lax.fori_loop(0, tb, wait_row, 0)

    # Single dense full-tile store (rows are already contiguous in the gather buffer).
    o_ref[...] = (rows_ref[slot].astype(jnp.float32) + scale * v).astype(o_ref.dtype)


def noisy_embedding(input_ids, table, v_noise, l_mag, *,
                    tb_max=2048, table_vmem_dtype=None, out_dtype=None,
                    force_hbm_gather=False):
    """input_ids: (B,S) int; table: (V,D); v_noise: (B,S,D); l_mag: (B,S).

    table_vmem_dtype: e.g. jnp.bfloat16 to halve the table's VMEM footprint (compute stays f32).
    out_dtype: e.g. jnp.bfloat16 to cut output HBM traffic if the consumer accepts it.
    """
    B, S = input_ids.shape
    V, D = table.shape
    N = B * S

    # ---- generation-aware VMEM budgeting -------------------------------------------------
    try:
        vmem_cap = int(pltpu.get_tpu_info().vmem_capacity_bytes)
    except Exception:
        vmem_cap = 64 * 1024 * 1024            # conservative floor (v7x: 64 MiB per TensorCore)

    t_dtype = jnp.dtype(table_vmem_dtype) if table_vmem_dtype is not None else jnp.dtype(table.dtype)
    o_dtype = jnp.dtype(out_dtype) if out_dtype is not None else jnp.dtype(jnp.float32)
    table_bytes = V * D * t_dtype.itemsize

    # Whole-array VMEM operand => exactly one copy of the table in VMEM (no double buffering).
    table_resident = (not force_hbm_gather) and (table_bytes <= int(0.55 * vmem_cap))

    # Per-token VMEM for pipelined tiles: v (x2 buffers) + out (x2) + noise/rows scratch (<=2).
    per_tok_bytes = 6 * D * 4
    tile_budget = int(0.8 * vmem_cap) - (table_bytes if table_resident else 0)
    tb_from_vmem = max(8, (tile_budget // per_tok_bytes) // 8 * 8)
    tb_cap_by_n = max(8, _round_up(-(-N // 2), 8))      # keep >= 2 grid steps for megacore
    TB = int(min(tb_max, tb_from_vmem, tb_cap_by_n))
    N_pad = _round_up(N, TB)
    G = N_pad // TB

    ids_flat = input_ids.reshape(N).astype(jnp.int32)
    v_flat = v_noise.reshape(N, D).astype(jnp.float32)
    l_flat = l_mag.reshape(N, 1).astype(jnp.float32)
    if N_pad != N:
        pad = N_pad - N
        ids_flat = jnp.pad(ids_flat, (0, pad))           # id 0 is always in range
        v_flat = jnp.pad(v_flat, ((0, pad), (0, 0)))
        l_flat = jnp.pad(l_flat, ((0, pad), (0, 0)))
    ids_tiles = ids_flat.reshape(G, TB)
    table_in = table if table_vmem_dtype is None else table.astype(t_dtype)

    if table_resident:
        kernel = _kernel_table_vmem
        in_specs = [
            pl.BlockSpec(memory_space=pl.ANY),                   # ids (G, TB): stay in HBM
            pl.BlockSpec((TB, D), lambda i: (i, 0)),             # gaussian directions
            pl.BlockSpec((TB, 1), lambda i: (i, 0)),             # gamma magnitudes
            pl.BlockSpec(memory_space=pltpu.MemorySpace.VMEM),   # whole table: ONE VMEM copy
        ]
        scratch_shapes = [
            pltpu.SMEM((TB,), jnp.int32),                        # this tile's token ids
            pltpu.VMEM((TB, D), jnp.float32),                    # noise tile
            pltpu.SemaphoreType.DMA(()),                         # ids DMA semaphore
        ]
        dim_sem = ("parallel",)                                  # steps are independent
        vmem_needed = table_bytes + 5 * TB * D * 4
    else:
        kernel = _kernel_table_hbm
        in_specs = [
            pl.BlockSpec(memory_space=pl.ANY),                   # ids (G, TB)
            pl.BlockSpec((TB, D), lambda i: (i, 0)),
            pl.BlockSpec((TB, 1), lambda i: (i, 0)),
            pl.BlockSpec(memory_space=pl.ANY),                   # table stays in HBM
        ]
        scratch_shapes = [
            pltpu.SMEM((TB,), jnp.int32),
            pltpu.VMEM((2, TB, D), t_dtype),                     # double-buffered gathered rows
            pltpu.SemaphoreType.DMA(()),                         # ids DMA semaphore
            pltpu.SemaphoreType.DMA((2,)),                       # per-slot row-gather semaphores
        ]
        # Cross-step prefetch (prologue at i == 0) requires sequential grid order.
        dim_sem = ("arbitrary",)
        vmem_needed = 4 * TB * D * 4 + 2 * TB * D * t_dtype.itemsize

    vmem_limit = int(min(int(0.95 * vmem_cap), max(vmem_needed + (8 << 20), 32 << 20)))

    grid_spec = pltpu.PrefetchScalarGridSpec(
        num_scalar_prefetch=0,
        grid=(G,),
        in_specs=in_specs,
        out_specs=pl.BlockSpec((TB, D), lambda i: (i, 0)),
        scratch_shapes=scratch_shapes,
    )

    out = pl.pallas_call(
        kernel,
        out_shape=jax.ShapeDtypeStruct((N_pad, D), o_dtype),
        grid_spec=grid_spec,
        compiler_params=pltpu.CompilerParams(
            dimension_semantics=dim_sem,
            vmem_limit_bytes=vmem_limit,
        ),
    )(ids_tiles, v_flat, l_flat, table_in)

    return out[:N].reshape(B, S, D)


if __name__ == "__main__":
    B, S, V, D = 2, 8, 64, 128
    epsilon = 0.1

    key = jax.random.PRNGKey(0)
    k_tab, k_ids, k_v, k_gamma = jax.random.split(key, 4)

    # deterministic "parameters" (embedding table) and inputs
    table = jax.random.normal(k_tab, (V, D), dtype=jnp.float32) * 0.02
    input_ids = jax.random.randint(k_ids, (B, S), 0, V, dtype=jnp.int32)

    # noise sampling (glue, outside the kernel):
    #   v ~ N(0, I);  l ~ Gamma(concentration=D, rate=epsilon)
    v_noise = jax.random.normal(k_v, (B, S, D), dtype=jnp.float32)
    l_mag = jax.random.gamma(k_gamma, float(D), shape=(B, S), dtype=jnp.float32) / epsilon

    out = noisy_embedding(input_ids, table, v_noise, l_mag)
    out = jax.block_until_ready(out)

    # pure-JAX reference with identical precomputed noise
    emb_ref = table[input_ids]                                        # (B, S, D)
    norm_ref = jnp.linalg.norm(v_noise, axis=-1, keepdims=True)
    ref = emb_ref + l_mag[..., None] * (v_noise / (norm_ref + 1e-8))

    assert out.shape == (B, S, D)
    assert jnp.allclose(out, ref, rtol=1e-5, atol=1e-3), "mismatch vs reference"
    print("KERNEL_OK")
</pallas_src>

<mosaic_0001>
module attributes {stable_mosaic.version = 11 : i64} {
  func.func @_kernel_table_vmem(%arg0: i32, %arg1: memref<2x8xi32, #tpu.memory_space<any>>, %arg2: memref<8x128xf32, #tpu.memory_space<vmem>>, %arg3: memref<8x1xf32, #tpu.memory_space<vmem>>, %arg4: memref<64x128xf32, #tpu.memory_space<vmem>>, %arg5: memref<8x128xf32, #tpu.memory_space<vmem>>, %arg6: memref<8xi32, #tpu.memory_space<smem>>, %arg7: memref<8x128xf32, #tpu.memory_space<vmem>>, %arg8: memref<!tpu.dma_semaphore, #tpu.memory_space<semaphore_mem>>) attributes {dimension_semantics = [#tpu.dimension_semantics<parallel>], iteration_bounds = array<i64: 2>, scalar_prefetch = 0 : i64, scratch_operands = 3 : i64, tpu.core_type = #tpu.core_type<tc>, window_params = [{}, {transform_indices = @transform_1, window_bounds = array<i64: 8, 128>}, {transform_indices = @transform_2, window_bounds = array<i64: 8, 1>}, {pipeline_mode = #tpu.pipeline_mode<synchronous>, transform_indices = @transform_3, window_bounds = array<i64: 64, 128>}, {transform_indices = @transform_4, window_bounds = array<i64: 8, 128>}]} {
    %c0_i32 = arith.constant 0 : i32
    %0 = tpu.memref_slice %arg1[%arg0, %c0_i32] : memref<2x8xi32, #tpu.memory_space<any>> -> memref<1x8xi32, #tpu.memory_space<any>>
    %1 = tpu.memref_squeeze %0 : memref<1x8xi32, #tpu.memory_space<any>> -> memref<8xi32, #tpu.memory_space<any>>
    tpu.enqueue_dma source(%1 : memref<8xi32, #tpu.memory_space<any>>) target(%arg6 : memref<8xi32, #tpu.memory_space<smem>>) target_semaphore(%arg8 : memref<!tpu.dma_semaphore, #tpu.memory_space<semaphore_mem>>)
    %c0 = arith.constant 0 : index
    %c0_0 = arith.constant 0 : index
    %2 = vector.load %arg2[%c0, %c0_0] : memref<8x128xf32, #tpu.memory_space<vmem>>, vector<8x128xf32>
    %3 = arith.mulf %2, %2 : vector<8x128xf32>
    %cst = arith.constant dense<0.000000e+00> : vector<8xf32>
    %4 = vector.multi_reduction <add>, %3, %cst [1] : vector<8x128xf32> to vector<8xf32>
    %5 = vector.shape_cast %4 : vector<8xf32> to vector<8x1xf32>
    %c0_1 = arith.constant 0 : index
    %c0_2 = arith.constant 0 : index
    %6 = vector.load %arg3[%c0_1, %c0_2] : memref<8x1xf32, #tpu.memory_space<vmem>>, vector<8x1xf32>
    %cst_3 = arith.constant 1.000000e-16 : f32
    %7 = vector.broadcast %cst_3 : f32 to vector<8x1xf32>
    %8 = arith.addf %5, %7 : vector<8x1xf32>
    %9 = math.rsqrt %8 : vector<8x1xf32>
    %10 = arith.mulf %6, %9 : vector<8x1xf32>
    %11 = vector.broadcast %10 : vector<8x1xf32> to vector<8x128xf32>
    %12 = arith.mulf %11, %2 : vector<8x128xf32>
    %c0_4 = arith.constant 0 : index
    %c0_5 = arith.constant 0 : index
    %13 = vector.load %arg7[%c0_4, %c0_5] : memref<8x128xf32, #tpu.memory_space<vmem>>, vector<8x128xf32>
    tpu.vector_store %arg7[%c0_4, %c0_5], %12 {strides = array<i32>} : memref<8x128xf32, #tpu.memory_space<vmem>>, vector<8x128xf32>,
    %c0_i32_6 = arith.constant 0 : i32
    %14 = tpu.memref_slice %arg1[%arg0, %c0_i32_6] : memref<2x8xi32, #tpu.memory_space<any>> -> memref<1x8xi32, #tpu.memory_space<any>>
    %15 = tpu.memref_squeeze %14 : memref<1x8xi32, #tpu.memory_space<any>> -> memref<8xi32, #tpu.memory_space<any>>
    tpu.wait_dma2 semaphore(%arg8 : memref<!tpu.dma_semaphore, #tpu.memory_space<semaphore_mem>>) src(%15 : memref<8xi32, #tpu.memory_space<any>>) dst(%arg6 : memref<8xi32, #tpu.memory_space<smem>>)
    %c0_i32_7 = arith.constant 0 : i32
    %16 = arith.index_cast %c0_i32_7 : i32 to index
    %17 = memref.load %arg6[%16] : memref<8xi32, #tpu.memory_space<smem>>
    %18 = arith.index_cast %17 : i32 to index
    %c0_8 = arith.constant 0 : index
    %19 = vector.load %arg4[%18, %c0_8] : memref<64x128xf32, #tpu.memory_space<vmem>>, vector<1x128xf32>
    %20 = arith.index_cast %c0_i32_7 : i32 to index
    %c0_9 = arith.constant 0 : index
    %21 = vector.load %arg7[%20, %c0_9] : memref<8x128xf32, #tpu.memory_space<vmem>>, vector<1x128xf32>
    %22 = arith.addf %19, %21 : vector<1x128xf32>
    %23 = arith.index_cast %c0_i32_7 : i32 to index
    %c0_10 = arith.constant 0 : index
    %24 = vector.load %arg5[%23, %c0_10] : memref<8x128xf32, #tpu.memory_space<vmem>>, vector<1x128xf32>
    tpu.vector_store %arg5[%23, %c0_10], %22 {strides = array<i32>} : memref<8x128xf32, #tpu.memory_space<vmem>>, vector<1x128xf32>,
    %c1_i32 = arith.constant 1 : i32
    %25 = arith.index_cast %c1_i32 : i32 to index
    %26 = memref.load %arg6[%25] : memref<8xi32, #tpu.memory_space<smem>>
    %27 = arith.index_cast %26 : i32 to index
    %c0_11 = arith.constant 0 : index
    %28 = vector.load %arg4[%27, %c0_11] : memref<64x128xf32, #tpu.memory_space<vmem>>, vector<1x128xf32>
    %29 = arith.index_cast %c1_i32 : i32 to index
    %c0_12 = arith.constant 0 : index
    %30 = vector.load %arg7[%29, %c0_12] : memref<8x128xf32, #tpu.memory_space<vmem>>, vector<1x128xf32>
    %31 = arith.addf %28, %30 : vector<1x128xf32>
    %32 = arith.index_cast %c1_i32 : i32 to index
    %c0_13 = arith.constant 0 : index
    %33 = vector.load %arg5[%32, %c0_13] : memref<8x128xf32, #tpu.memory_space<vmem>>, vector<1x128xf32>
    tpu.vector_store %arg5[%32, %c0_13], %31 {strides = array<i32>} : memref<8x128xf32, #tpu.memory_space<vmem>>, vector<1x128xf32>,
    %c2_i32 = arith.constant 2 : i32
    %34 = arith.index_cast %c2_i32 : i32 to index
    %35 = memref.load %arg6[%34] : memref<8xi32, #tpu.memory_space<smem>>
    %36 = arith.index_cast %35 : i32 to index
    %c0_14 = arith.constant 0 : index
    %37 = vector.load %arg4[%36, %c0_14] : memref<64x128xf32, #tpu.memory_space<vmem>>, vector<1x128xf32>
    %38 = arith.index_cast %c2_i32 : i32 to index
    %c0_15 = arith.constant 0 : index
    %39 = vector.load %arg7[%38, %c0_15] : memref<8x128xf32, #tpu.memory_space<vmem>>, vector<1x128xf32>
    %40 = arith.addf %37, %39 : vector<1x128xf32>
    %41 = arith.index_cast %c2_i32 : i32 to index
    %c0_16 = arith.constant 0 : index
    %42 = vector.load %arg5[%41, %c0_16] : memref<8x128xf32, #tpu.memory_space<vmem>>, vector<1x128xf32>
    tpu.vector_store %arg5[%41, %c0_16], %40 {strides = array<i32>} : memref<8x128xf32, #tpu.memory_space<vmem>>, vector<1x128xf32>,
    %c3_i32 = arith.constant 3 : i32
    %43 = arith.index_cast %c3_i32 : i32 to index
    %44 = memref.load %arg6[%43] : memref<8xi32, #tpu.memory_space<smem>>
    %45 = arith.index_cast %44 : i32 to index
    %c0_17 = arith.constant 0 : index
    %46 = vector.load %arg4[%45, %c0_17] : memref<64x128xf32, #tpu.memory_space<vmem>>, vector<1x128xf32>
    %47 = arith.index_cast %c3_i32 : i32 to index
    %c0_18 = arith.constant 0 : index
    %48 = vector.load %arg7[%47, %c0_18] : memref<8x128xf32, #tpu.memory_space<vmem>>, vector<1x128xf32>
    %49 = arith.addf %46, %48 : vector<1x128xf32>
    %50 = arith.index_cast %c3_i32 : i32 to index
    %c0_19 = arith.constant 0 : index
    %51 = vector.load %arg5[%50, %c0_19] : memref<8x128xf32, #tpu.memory_space<vmem>>, vector<1x128xf32>
    tpu.vector_store %arg5[%50, %c0_19], %49 {strides = array<i32>} : memref<8x128xf32, #tpu.memory_space<vmem>>, vector<1x128xf32>,
    %c4_i32 = arith.constant 4 : i32
    %52 = arith.index_cast %c4_i32 : i32 to index
    %53 = memref.load %arg6[%52] : memref<8xi32, #tpu.memory_space<smem>>
    %54 = arith.index_cast %53 : i32 to index
    %c0_20 = arith.constant 0 : index
    %55 = vector.load %arg4[%54, %c0_20] : memref<64x128xf32, #tpu.memory_space<vmem>>, vector<1x128xf32>
    %56 = arith.index_cast %c4_i32 : i32 to index
    %c0_21 = arith.constant 0 : index
    %57 = vector.load %arg7[%56, %c0_21] : memref<8x128xf32, #tpu.memory_space<vmem>>, vector<1x128xf32>
    %58 = arith.addf %55, %57 : vector<1x128xf32>
    %59 = arith.index_cast %c4_i32 : i32 to index
    %c0_22 = arith.constant 0 : index
    %60 = vector.load %arg5[%59, %c0_22] : memref<8x128xf32, #tpu.memory_space<vmem>>, vector<1x128xf32>
    tpu.vector_store %arg5[%59, %c0_22], %58 {strides = array<i32>} : memref<8x128xf32, #tpu.memory_space<vmem>>, vector<1x128xf32>,
    %c5_i32 = arith.constant 5 : i32
    %61 = arith.index_cast %c5_i32 : i32 to index
    %62 = memref.load %arg6[%61] : memref<8xi32, #tpu.memory_space<smem>>
    %63 = arith.index_cast %62 : i32 to index
    %c0_23 = arith.constant 0 : index
    %64 = vector.load %arg4[%63, %c0_23] : memref<64x128xf32, #tpu.memory_space<vmem>>, vector<1x128xf32>
    %65 = arith.index_cast %c5_i32 : i32 to index
    %c0_24 = arith.constant 0 : index
    %66 = vector.load %arg7[%65, %c0_24] : memref<8x128xf32, #tpu.memory_space<vmem>>, vector<1x128xf32>
    %67 = arith.addf %64, %66 : vector<1x128xf32>
    %68 = arith.index_cast %c5_i32 : i32 to index
    %c0_25 = arith.constant 0 : index
    %69 = vector.load %arg5[%68, %c0_25] : memref<8x128xf32, #tpu.memory_space<vmem>>, vector<1x128xf32>
    tpu.vector_store %arg5[%68, %c0_25], %67 {strides = array<i32>} : memref<8x128xf32, #tpu.memory_space<vmem>>, vector<1x128xf32>,
    %c6_i32 = arith.constant 6 : i32
    %70 = arith.index_cast %c6_i32 : i32 to index
    %71 = memref.load %arg6[%70] : memref<8xi32, #tpu.memory_space<smem>>
    %72 = arith.index_cast %71 : i32 to index
    %c0_26 = arith.constant 0 : index
    %73 = vector.load %arg4[%72, %c0_26] : memref<64x128xf32, #tpu.memory_space<vmem>>, vector<1x128xf32>
    %74 = arith.index_cast %c6_i32 : i32 to index
    %c0_27 = arith.constant 0 : index
    %75 = vector.load %arg7[%74, %c0_27] : memref<8x128xf32, #tpu.memory_space<vmem>>, vector<1x128xf32>
    %76 = arith.addf %73, %75 : vector<1x128xf32>
    %77 = arith.index_cast %c6_i32 : i32 to index
    %c0_28 = arith.constant 0 : index
    %78 = vector.load %arg5[%77, %c0_28] : memref<8x128xf32, #tpu.memory_space<vmem>>, vector<1x128xf32>
    tpu.vector_store %arg5[%77, %c0_28], %76 {strides = array<i32>} : memref<8x128xf32, #tpu.memory_space<vmem>>, vector<1x128xf32>,
    %c7_i32 = arith.constant 7 : i32
    %79 = arith.index_cast %c7_i32 : i32 to index
    %80 = memref.load %arg6[%79] : memref<8xi32, #tpu.memory_space<smem>>
    %81 = arith.index_cast %80 : i32 to index
    %c0_29 = arith.constant 0 : index
    %82 = vector.load %arg4[%81, %c0_29] : memref<64x128xf32, #tpu.memory_space<vmem>>, vector<1x128xf32>
    %83 = arith.index_cast %c7_i32 : i32 to index
    %c0_30 = arith.constant 0 : index
    %84 = vector.load %arg7[%83, %c0_30] : memref<8x128xf32, #tpu.memory_space<vmem>>, vector<1x128xf32>
    %85 = arith.addf %82, %84 : vector<1x128xf32>
    %86 = arith.index_cast %c7_i32 : i32 to index
    %c0_31 = arith.constant 0 : index
    %87 = vector.load %arg5[%86, %c0_31] : memref<8x128xf32, #tpu.memory_space<vmem>>, vector<1x128xf32>
    tpu.vector_store %arg5[%86, %c0_31], %85 {strides = array<i32>} : memref<8x128xf32, #tpu.memory_space<vmem>>, vector<1x128xf32>,
    %c8_i32 = arith.constant 8 : i32
    return
  }
  func.func @transform_1(%arg0: i32) -> (i32, i32) {
    %c0_i32 = arith.constant 0 : i32
    %c0_i32_0 = arith.constant 0 : i32
    return %arg0, %c0_i32 : i32, i32
  }
  func.func @transform_2(%arg0: i32) -> (i32, i32) {
    %c0_i32 = arith.constant 0 : i32
    %c0_i32_0 = arith.constant 0 : i32
    return %arg0, %c0_i32 : i32, i32
  }
  func.func @transform_3(%arg0: i32) -> (i32, i32) {
    %c0_i32 = arith.constant 0 : i32
    %c0_i32_0 = arith.constant 0 : i32
    %c0_i32_1 = arith.constant 0 : i32
    return %c0_i32, %c0_i32_0 : i32, i32
  }
  func.func @transform_4(%arg0: i32) -> (i32, i32) {
    %c0_i32 = arith.constant 0 : i32
    %c0_i32_0 = arith.constant 0 : i32
    return %arg0, %c0_i32 : i32, i32
  }
}

</mosaic_0001>

<llo_original>
// kernel: tpu_custom_call.1
$region0: #{tpu_custom_call.1}
  #allocation0 [shape = 'u32[]', space=smem, size = 0x4, offset = 0x4, fixed_abs, tag = 'smem constant byte address 0x4 - core index']
  #allocation1 [shape = 'u32[144,128]{1,0:T(1,128)}', space=vmem, size = 0x12000, scoped, tag = 'internal scratch']
  #allocation2 [shape = 's32[8]{0:T(128)}', space=smem, size = 0x200, scoped, tag = 'scratch operand']
  #allocation3 [shape = 'f32[8,128]{1,0:T(8,128)}', space=vmem, size = 0x1000, scoped, tag = 'scratch operand']
  #allocation4 [shape = 's32[1]{0}', space=sflag, size = 0x4, scoped, tag = 'scratch operand']
  #allocation9 [shape = 's32[]', space=sflag, size = 0x4, offset = 0, fixed_abs, tag = 'sflag constant byte address 0x0 - dummy sync flag']
  #allocation10 [shape = 's32[]', space=sflag, size = 0x4, offset = 0, fixed_abs, tag = 'sflag constant byte address 0x0 - dummy sync flag']
  #allocation11 [shape = 'u32[]', space=smem, size = 0x4, offset = 0x44, fixed_abs, tag = 'smem constant byte address 0x44 - assertion arg 0']
  #allocation12 [shape = 'u32[]', space=smem, size = 0x4, offset = 0x48, fixed_abs, tag = 'smem constant byte address 0x48 - assertion arg 1']
  %s0 = inlined_call_operand.vmem [shape: s32[2,8], index: 0, kind: input, shape index: {}]
  %s1 = inlined_call_operand.vmem [shape: f32[16,128], index: 1, kind: input, shape index: {}]
  %s2 = inlined_call_operand.vmem [shape: f32[16,1], index: 2, kind: input, shape index: {}]
  %s3 = inlined_call_operand.hbm [shape: f32[64,128], index: 3, kind: input, shape index: {}]
  %s4 = inlined_call_operand.hbm [shape: f32[16,128], index: 4, kind: output, shape index: {}]
  %s5 = sld [smem:[#allocation0]]
  $region53: #{tpu_custom_call.1} parent=0
    _
  %s7 = ssub.s32 1, %s5
  %s8 = scalar_select 0, %s7, %s5
  $region1: #{tpu_custom_call.1} parent=0
    #allocation5 [shape = 'u8[32768]{0}', space=vmem, size = 0x8000, scoped, tag = 'input window, operand 3, single buffered']
    #allocation6 [shape = 's32[2]{0}', space=sflag, size = 0x8, scoped, tag = 'scoped memory for tpu_custom_call.1']
    #allocation7 [shape = 's32[2]{0}', space=sflag, size = 0x8, scoped, tag = 'scoped memory for tpu_custom_call.1']
    #allocation8 [shape = 'u8[8192]{0}', space=vmem, size = 0x2000, scoped, tag = 'output window, operand 0']
    %9 = vsyncpa [#allocation6], 0
    %10 = vsyncpa [#allocation7], 0
    %s11 = scalar_lea.sflag [#allocation7], 1
    %12 = vsyncpa %s11, 0
    loop: start=0, step=1, limit=4
    $region2: #{tpu_custom_call.1} parent=1 // loop_pre_header
      _
    $region3: #{tpu_custom_call.1} parent=1 // loop_header
      %s14 = sphi 0, %s18
      %p15 = scmp.ge.s32.totalorder %s14, 4
      %s24 = sphi 0, %s26
      %s27 = sphi 0, %s24
      %s28 = sphi 0, %s27
      %s44 = sphi 0, %s28
      %s50 = sphi 0, %s52
      %s53 = sphi 0, %s50
      %s54 = sphi 0, %s53
      %s70 = sphi 0, %s54
      %s74 = sphi 0, %s74
      %s76 = sphi 0, %s74
      %s77 = sphi 0, %s76
      %s91 = sphi 0, %s77
      %s97 = sphi 0, %s99
      %s100 = sphi 0, %s97
      %s101 = sphi 0, %s100
      %s117 = sphi 0, %s101
    $region4: #{tpu_custom_call.1} parent=1 // loop_header_branch
      %17 = sbr.rel (%p15) target = $region8
    $region5: #{tpu_custom_call.1} parent=1 // loop_body
      %s19 = ssub.s32 %s14, 1
      %s20 = ssub.s32 %s14, 2
      %s21 = sadd.s32 %s14, 1
      %s22 = ssub.s32 %s14, %s21
      %p23 = scmp.eq.s32.totalorder %s22, 0
      %s25 = sadd.s32 %s24, 1
      %s26 = scalar_select %p23, %s24, %s25
      %p29 = pneg %p23
      %p30 = scmp.eq.s32.totalorder %s14, 1
      %p31 = por %p29, %p30
      %p32 = scmp.ne.s32.totalorder %s24, %s27
      %p33 = scmp.eq.s32.totalorder %s14, 0
      %p34 = por %p32, %p33
      %p35 = scmp.ne.s32.totalorder %s24, %s27
      %p36 = scmp.eq.s32.totalorder %s19, 1
      %p37 = por %p35, %p36
      %p38 = scmp.ne.s32.totalorder %s27, %s28
      %p39 = scmp.eq.s32.totalorder %s19, 0
      %p40 = por %p38, %p39
      %p41 = scmp.ne.s32.totalorder %s27, %s28
      %p42 = scmp.eq.s32.totalorder %s20, 1
      %p43 = por %p41, %p42
      %p45 = scmp.ne.s32.totalorder %s28, %s44
      %p46 = scmp.eq.s32.totalorder %s20, 0
      %p47 = por %p45, %p46
      %s48 = ssub.s32 %s14, %s21
      %p49 = scmp.eq.s32.totalorder %s48, 0
      %s51 = sadd.s32 %s50, 1
      %s52 = scalar_select %p49, %s50, %s51
      %p55 = pneg %p49
      %p56 = scmp.eq.s32.totalorder %s14, 1
      %p57 = por %p55, %p56
      %p58 = scmp.ne.s32.totalorder %s50, %s53
      %p59 = scmp.eq.s32.totalorder %s14, 0
      %p60 = por %p58, %p59
      %p61 = scmp.ne.s32.totalorder %s50, %s53
      %p62 = scmp.eq.s32.totalorder %s19, 1
      %p63 = por %p61, %p62
      %p64 = scmp.ne.s32.totalorder %s53, %s54
      %p65 = scmp.eq.s32.totalorder %s19, 0
      %p66 = por %p64, %p65
      %p67 = scmp.ne.s32.totalorder %s53, %s54
      %p68 = scmp.eq.s32.totalorder %s20, 1
      %p69 = por %p67, %p68
      %p71 = scmp.ne.s32.totalorder %s54, %s70
      %p72 = scmp.eq.s32.totalorder %s20, 0
      %p73 = por %p71, %p72
      %s75 = sadd.s32 %s74, 1
      %p78 = scmp.eq.s32.totalorder %s14, 1
      %p79 = scmp.ne.s32.totalorder %s74, %s76
      %p80 = scmp.eq.s32.totalorder %s14, 0
      %p81 = por %p79, %p80
      %p82 = scmp.ne.s32.totalorder %s74, %s76
      %p83 = scmp.eq.s32.totalorder %s19, 1
      %p84 = por %p82, %p83
      %p85 = scmp.ne.s32.totalorder %s76, %s77
      %p86 = scmp.eq.s32.totalorder %s19, 0
      %p87 = por %p85, %p86
      %p88 = scmp.ne.s32.totalorder %s76, %s77
      %p89 = scmp.eq.s32.totalorder %s20, 1
      %p90 = por %p88, %p89
      %p92 = scmp.ne.s32.totalorder %s77, %s91
      %p93 = scmp.eq.s32.totalorder %s20, 0
      %p94 = por %p92, %p93
      %s95 = ssub.s32 %s14, %s21
      %p96 = scmp.eq.s32.totalorder %s95, 0
      %s98 = sadd.s32 %s97, 1
      %s99 = scalar_select %p96, %s97, %s98
      %p102 = pneg %p96
      %p103 = scmp.eq.s32.totalorder %s14, 1
      %p104 = por %p102, %p103
      %p105 = scmp.ne.s32.totalorder %s97, %s100
      %p106 = scmp.eq.s32.totalorder %s14, 0
      %p107 = por %p105, %p106
      %p108 = scmp.ne.s32.totalorder %s97, %s100
      %p109 = scmp.eq.s32.totalorder %s19, 1
      %p110 = por %p108, %p109
      %p111 = scmp.ne.s32.totalorder %s100, %s101
      %p112 = scmp.eq.s32.totalorder %s19, 0
      %p113 = por %p111, %p112
      %p114 = scmp.ne.s32.totalorder %s100, %s101
      %p115 = scmp.eq.s32.totalorder %s20, 1
      %p116 = por %p114, %p115
      %p118 = scmp.ne.s32.totalorder %s101, %s117
      %p119 = scmp.eq.s32.totalorder %s20, 0
      %p120 = por %p118, %p119
      %p121 = scmp.le.s32.totalorder 1, %s14
      %p122 = scmp.lt.s32.totalorder %s14, 3
      %p123 = pnand %p121, %p122
      %p124 = pneg %p123
      // Predicated region
      $region9: #{tpu_custom_call.1} parent=5 // pred_check
        _
      $region10: #{tpu_custom_call.1} parent=5 // pred_check_branch
        %126 = sbr.rel (%p123) target = $region12
      $region11: #{tpu_custom_call.1} parent=5 // pred_region
        %s127 = ssub.s32 %s14, 1
        // Predicated region
        $region13: #{tpu_custom_call.1} parent=11 // pred_check
          %p128 = pneg %p87
        $region14: #{tpu_custom_call.1} parent=11 // pred_check_branch
          %130 = sbr.rel (%p128) target = $region16
        $region15: #{tpu_custom_call.1} parent=11 // pred_region
          %s132 = ssub.s32 1024, 1024
          %133 = vsyncadd [#allocation6], %s132
          %s134 = sshll.u32 [#allocation5], 4
          %s135 = int_to_ptr.vmem [resolvable:$true] %s134
          %140 = dma.hbm_to_vmem [thread:$0]  %s3, 1024, %s135, [#allocation6], 128, 128, 8
        $region16: #{tpu_custom_call.1} parent=11 // pred_fallthru
          _
      $region12: #{tpu_custom_call.1} parent=5 // pred_fallthru
        _
      %p141 = scmp.lt.s32.totalorder %s14, 2
      // Predicated region
      $region17: #{tpu_custom_call.1} parent=5 // pred_check
        %p142 = pneg %p141
      $region18: #{tpu_custom_call.1} parent=5 // pred_check_branch
        %144 = sbr.rel (%p142) target = $region20
      $region19: #{tpu_custom_call.1} parent=5 // pred_region
        // Predicated region
        $region21: #{tpu_custom_call.1} parent=19 // pred_check
          %p145 = pneg %p34
        $region22: #{tpu_custom_call.1} parent=19 // pred_check_branch
          %147 = sbr.rel (%p145) target = $region24
        $region23: #{tpu_custom_call.1} parent=19 // pred_region
          %p148 = scmp.lt.s32.totalorder %s14, 1
          %s149 = scalar_select %p148, %s14, 1
          %s150 = smul.addr %s149, 8
          %s151 = scalar_lea.vmem %s1, %s150
        $region24: #{tpu_custom_call.1} parent=19 // pred_fallthru
          _
        // Predicated region
        $region25: #{tpu_custom_call.1} parent=19 // pred_check
          %p152 = pneg %p60
        $region26: #{tpu_custom_call.1} parent=19 // pred_check_branch
          %154 = sbr.rel (%p152) target = $region28
        $region27: #{tpu_custom_call.1} parent=19 // pred_region
          %p155 = scmp.lt.s32.totalorder %s14, 1
          %s156 = scalar_select %p155, %s14, 1
          %s157 = smul.addr %s156, 8
          %s158 = scalar_lea.vmem %s2, %s157
        $region28: #{tpu_custom_call.1} parent=19 // pred_fallthru
          _
      $region20: #{tpu_custom_call.1} parent=5 // pred_fallthru
        _
      %p159 = scmp.le.s32.totalorder 1, %s14
      %p160 = scmp.lt.s32.totalorder %s14, 3
      %p161 = pnand %p159, %p160
      %p162 = pneg %p161
      // Predicated region
      $region29: #{tpu_custom_call.1} parent=5 // pred_check
        _
      $region30: #{tpu_custom_call.1} parent=5 // pred_check_branch
        %164 = sbr.rel (%p161) target = $region32
      $region31: #{tpu_custom_call.1} parent=5 // pred_region
        %s165 = ssub.s32 %s14, 1
        // Predicated region
        $region33: #{tpu_custom_call.1} parent=31 // pred_check
          %p166 = pneg %p87
        $region34: #{tpu_custom_call.1} parent=31 // pred_check_branch
          %168 = sbr.rel (%p166) target = $region36
        $region35: #{tpu_custom_call.1} parent=31 // pred_region
          %169 = dma.done [#allocation6], 1024
        $region36: #{tpu_custom_call.1} parent=31 // pred_fallthru
          _
        %p170 = scmp.lt.s32.totalorder %s19, 1
        %s171 = scalar_select %p170, %s19, 1
        %s172 = smul.addr %s171, 8
        %s173 = scalar_lea.vmem %s1, %s172
        %p174 = pneg %p40
        %p175 = pneg %p37
        %p176 = scmp.lt.s32.totalorder %s19, 1
        %s177 = scalar_select %p176, %s19, 1
        %s178 = smul.addr %s177, 8
        %s179 = scalar_lea.vmem %s2, %s178
        %p180 = pneg %p66
        %p181 = pneg %p63
        %p182 = pneg %p87
        %p183 = pneg %p84
        %p184 = pneg %p113
        %p185 = pneg %p110
        %s186 = sand.u32 %s100, 1
        %s187 = scalar_lea.sflag [#allocation7], %s186
        %s188 = sand.u32 %s100, 1
        %s189 = smul.addr %s188, 8
        %s190 = scalar_lea.vmem [#allocation8], %s189
        %p191 = scmp.lt.s32.totalorder %s19, 1
        %s192 = scalar_select %p191, %s19, 1
        %s193 = smul.addr %s192, 8
        %s194 = scalar_lea.vmem %s1, %s193
        %p195 = scmp.lt.s32.totalorder %s19, 1
        %s196 = scalar_select %p195, %s19, 1
        %s197 = smul.addr %s196, 8
        %s198 = scalar_lea.vmem %s2, %s197
        %s199 = scalar_lea.vmem %s0, %s19
        // Predicated region
        $region37: #{tpu_custom_call.1} parent=31 // pred_check
          _
        $region38: #{tpu_custom_call.1} parent=31 // pred_check_branch
          %201 = sbr.rel target = $region40
        $region39: #{tpu_custom_call.1} parent=31 // pred_region
          %202 = sst [smem:[#allocation11]] [#allocation10]
          %203 = sst [smem:[#allocation12]] [#allocation9]
        $region40: #{tpu_custom_call.1} parent=31 // pred_fallthru
          _
        %205 = shalt.err (0)
        %s207 = sshll.u32 %s199, 4
        %s208 = int_to_ptr.vmem [resolvable:$true] %s207
        %210 = dma.vmem_to_smem %s208, 16, [#allocation2], [#allocation4]
        %v211 = vld [vmem:[%s194] sm:$0xff]
        %v212 = vmul.f32 %v211, %v211
        %213 = vadd.xlane.f32.xlu0 %v212
        %v214 = vpop.xlane.xlu0 %213
        %v215 = vld [vmem:[%s198] sm:$0xff]
        %v216 = vadd.f32 %v214, 1e-16
        %v217 = vrsqrt.pop %v216
        %v218 = vmul.f32 %v215, %v217
        %220 = vset.pattern.permute.xlu0 0
        %221 = vperm.xlu0 %220, %v218
        %v222 = vpop.permute.xlu0 %221
        %v224 = vmul.f32 %v222, %v211
        %225 = vst [vmem:[#allocation3] sm:$0xff] %v224
        %227 = dma.done [#allocation4], 16
        %228 = sfence
        %s229 = sld [smem:[#allocation2]]
        %s230 = scalar_lea.vmem [#allocation5], %s229
        %v231 = vld [vmem:[%s230] sm:$0x1]
        %v232 = vld [vmem:[#allocation3] sm:$0x1]
        %v233 = vadd.f32 %v231, %v232
        %234 = vst [vmem:[%s190] sm:$0x1] %v233
        %s235 = sld [smem:[#allocation2 + $0x1]]
        %s236 = scalar_lea.vmem [#allocation5], %s235
        %v237 = vld [vmem:[%s236] sm:$0x1]
        %v238 = vld [vmem:[#allocation3 + $0x1] sm:$0x1]
        %v239 = vadd.f32 %v237, %v238
        %240 = vst [vmem:[%s190 + $0x1] sm:$0x1] %v239
        %s241 = sld [smem:[#allocation2 + $0x2]]
        %s242 = scalar_lea.vmem [#allocation5], %s241
        %v243 = vld [vmem:[%s242] sm:$0x1]
        %v244 = vld [vmem:[#allocation3 + $0x2] sm:$0x1]
        %v245 = vadd.f32 %v243, %v244
        %246 = vst [vmem:[%s190 + $0x2] sm:$0x1] %v245
        %s247 = sld [smem:[#allocation2 + $0x3]]
        %s248 = scalar_lea.vmem [#allocation5], %s247
        %v249 = vld [vmem:[%s248] sm:$0x1]
        %v250 = vld [vmem:[#allocation3 + $0x3] sm:$0x1]
        %v251 = vadd.f32 %v249, %v250
        %252 = vst [vmem:[%s190 + $0x3] sm:$0x1] %v251
        %s253 = sld [smem:[#allocation2 + $0x4]]
        %s254 = scalar_lea.vmem [#allocation5], %s253
        %v255 = vld [vmem:[%s254] sm:$0x1]
        %v256 = vld [vmem:[#allocation3 + $0x4] sm:$0x1]
        %v257 = vadd.f32 %v255, %v256
        %258 = vst [vmem:[%s190 + $0x4] sm:$0x1] %v257
        %s259 = sld [smem:[#allocation2 + $0x5]]
        %s260 = scalar_lea.vmem [#allocation5], %s259
        %v261 = vld [vmem:[%s260] sm:$0x1]
        %v262 = vld [vmem:[#allocation3 + $0x5] sm:$0x1]
        %v263 = vadd.f32 %v261, %v262
        %264 = vst [vmem:[%s190 + $0x5] sm:$0x1] %v263
        %s265 = sld [smem:[#allocation2 + $0x6]]
        %s266 = scalar_lea.vmem [#allocation5], %s265
        %v267 = vld [vmem:[%s266] sm:$0x1]
        %v268 = vld [vmem:[#allocation3 + $0x6] sm:$0x1]
        %v269 = vadd.f32 %v267, %v268
        %270 = vst [vmem:[%s190 + $0x6] sm:$0x1] %v269
        %s271 = sld [smem:[#allocation2 + $0x7]]
        %s272 = scalar_lea.vmem [#allocation5], %s271
        %v273 = vld [vmem:[%s272] sm:$0x1]
        %v274 = vld [vmem:[#allocation3 + $0x7] sm:$0x1]
        %v275 = vadd.f32 %v273, %v274
        %276 = vst [vmem:[%s190 + $0x7] sm:$0x1] %v275
        %s277 = sand.u32 %s100, 1
        %s278 = scalar_lea.sflag [#allocation7], %s277
        %s279 = sand.u32 %s100, 1
        %s280 = smul.addr %s279, 8
        %s281 = scalar_lea.vmem [#allocation8], %s280
        // Predicated region
        $region41: #{tpu_custom_call.1} parent=31 // pred_check
          %p282 = pneg %p110
        $region42: #{tpu_custom_call.1} parent=31 // pred_check_branch
          %284 = sbr.rel (%p282) target = $region44
        $region43: #{tpu_custom_call.1} parent=31 // pred_region
          %s286 = ssub.s32 128, 128
          %287 = vsyncadd %s278, %s286
          %s288 = smul.addr %s19, 128
          %s289 = scalar_lea.hbm %s4, %s288
          %s291 = sshll.u32 %s281, 4
          %s292 = int_to_ptr.vmem [resolvable:$true] %s291
          %294 = dma.vmem_to_hbm [thread:$0]  %s292, 128, %s289, %s278
        $region44: #{tpu_custom_call.1} parent=31 // pred_fallthru
          _
      $region32: #{tpu_custom_call.1} parent=5 // pred_fallthru
        _
      %p295 = scmp.le.s32.totalorder 2, %s14
      // Predicated region
      $region45: #{tpu_custom_call.1} parent=5 // pred_check
        %p296 = pneg %p295
      $region46: #{tpu_custom_call.1} parent=5 // pred_check_branch
        %298 = sbr.rel (%p296) target = $region48
      $region47: #{tpu_custom_call.1} parent=5 // pred_region
        %s299 = ssub.s32 %s14, 2
        // Predicated region
        $region49: #{tpu_custom_call.1} parent=47 // pred_check
          %p300 = pneg %p116
        $region50: #{tpu_custom_call.1} parent=47 // pred_check_branch
          %302 = sbr.rel (%p300) target = $region52
        $region51: #{tpu_custom_call.1} parent=47 // pred_region
          %s303 = sand.u32 %s101, 1
          %s304 = scalar_lea.sflag [#allocation7], %s303
          %s305 = sand.u32 %s101, 1
          %s306 = smul.addr %s305, 8
          %s307 = scalar_lea.vmem [#allocation8], %s306
          %308 = dma.done %s304, 128
        $region52: #{tpu_custom_call.1} parent=47 // pred_fallthru
          _
      $region48: #{tpu_custom_call.1} parent=5 // pred_fallthru
        _
    $region6: #{tpu_custom_call.1} parent=1 // loop_footer
      %s18 = sadd.s32 1, %s14
    $region7: #{tpu_custom_call.1} parent=1 // loop_footer_branch
      %13 = sbr.rel target = $region3
    $region8: #{tpu_custom_call.1} parent=1 // loop_exit
      _
    %309 = vsyncpa [#allocation6], 1
    %s310 = scalar_lea.sflag [#allocation6], 1
    %311 = vsyncpa %s310, 1
    %312 = vsyncpa [#allocation7], 1
    %s313 = scalar_lea.sflag [#allocation7], 1
    %314 = vsyncpa %s313, 1
  %315 = vsyncmov [#allocation4]
  %s316 = vpop.sfrf %315
  %p317 = scmp.eq.s32.totalorder %s316, 0
  %p318 = pneg %p317
  %320 = shalt.err (%p318)

</llo_original>
